<compile_context>
chip_gen: v6e
topology: v6e:2x2x1
jax: 0.10.0
libtpu: 0.0.40
codegen_flags: <defaults>
</compile_context>

<pallas_src>
import jax
import jax.numpy as jnp
from jax.experimental import pallas as pl
from jax.experimental.pallas import tpu as pltpu


def _scn_a_first_kernel(x_ref, w_ref, b_ref, a_ref, o_ref):
    """'A-first' ordering (used when C_eff <= C_out).

    x_ref: (1, C_effp, M*TBV)     lane-dense input slab
    w_ref: (C_out, K*C_effp)      [W_1 .. W_K] concatenated along columns
    b_ref: (C_out, TBV)           folded bias  sum_k b_k * colsum(A_k), T-tiled
    a_ref: (K, TBV, TBV)          block-diagonal I_{t_blk} (x) A_k
    o_ref: (1, C_out, M*TBV)      lane-dense output slab
    """
    K, TBV, _ = a_ref.shape
    m_sub = x_ref.shape[2] // TBV
    w = w_ref[...]
    b = b_ref[...]
    for m in range(m_sub):                    # static unroll over TBV sub-blocks
        x_m = x_ref[0, :, m * TBV:(m + 1) * TBV]               # (C_effp, TBV)
        # graph aggregation first: Z_k = x @ (I (x) A_k), stacked along sublanes
        z = jnp.concatenate(
            [jnp.dot(x_m, a_ref[k], preferred_element_type=jnp.float32)
             for k in range(K)], axis=0).astype(w.dtype)       # (K*C_effp, TBV)
        # one fused, deep-contraction weight matmul + folded bias
        out = jnp.dot(w, z, preferred_element_type=jnp.float32) + b
        o_ref[0, :, m * TBV:(m + 1) * TBV] = out.astype(o_ref.dtype)


def _scn_w_first_kernel(x_ref, w_ref, b_ref, a_ref, o_ref):
    """'W-first' ordering (used when C_eff > C_out).

    x_ref: (1, C_effp, M*TBV)
    w_ref: (K*C_out, C_effp)
    b_ref: (K*C_out, 1)
    a_ref: (K, TBV, TBV)
    o_ref: (1, C_out, M*TBV)
    """
    K, TBV, _ = a_ref.shape
    C_out = o_ref.shape[1]
    m_sub = x_ref.shape[2] // TBV
    w = w_ref[...]
    b = b_ref[...]
    for m in range(m_sub):
        x_m = x_ref[0, :, m * TBV:(m + 1) * TBV]
        y = (jnp.dot(w, x_m, preferred_element_type=jnp.float32) + b).astype(w.dtype)
        acc = jnp.dot(y[0:C_out, :], a_ref[0], preferred_element_type=jnp.float32)
        for k in range(1, K):
            acc = acc + jnp.dot(y[k * C_out:(k + 1) * C_out, :], a_ref[k],
                                preferred_element_type=jnp.float32)
        o_ref[0, :, m * TBV:(m + 1) * TBV] = acc.astype(o_ref.dtype)


def _pad_v(v):
    """Smallest divisor of 128 that is >= v (multiple of 128 for huge graphs)."""
    if v <= 128:
        for d in (1, 2, 4, 8, 16, 32, 64, 128):
            if d >= v:
                return d
    return -(-v // 128) * 128


def scn_forward(x, A, weight, bias, kernel_size,
                t_stride=1, t_padding=0, t_dilation=1, use_bf16=False):
    """Pallas implementation of SCN.forward.

    x:      (N, C_in, T, V) float32
    A:      (K, V, V) float32
    weight: (K*C_out, C_in, kt, 1) float32   (Conv2d weight)
    bias:   (K*C_out,) float32
    returns (out (N, C_out, T_out, V), A)

    NOTE: everything before the pallas_call is cheap host-side folding of the
    layer constants (W / bias / A); in a real model hoist it out (or jit the
    layer) so it runs once per layer, not per forward pass.
    """
    N, C_in, T, V = x.shape
    K = kernel_size
    assert A.shape[0] == K
    O = weight.shape[0]
    C_out = O // K
    kt = weight.shape[2]

    # ---- temporal im2col (a no-op for the default kt=1 / stride=1 / pad=0) ----
    if t_padding:
        x = jnp.pad(x, ((0, 0), (0, 0), (t_padding, t_padding), (0, 0)))
    T_in = x.shape[2]
    T_out = (T_in - (t_dilation * (kt - 1) + 1)) // t_stride + 1
    if kt == 1 and t_stride == 1:
        x_cat = x[:, :, :T_out, :]
    else:
        # TODO(synk): move temporal taps into the kernel via the index_map
        # (halo fetch) instead of host-side im2col, to keep HBM traffic at 1x.
        cols = []
        for dt in range(kt):
            start = dt * t_dilation
            stop = start + t_stride * (T_out - 1) + 1
            cols.append(x[:, :, start:stop:t_stride, :])
        x_cat = jnp.concatenate(cols, axis=1)               # (N, kt*C_in, T_out, V)
    C_eff = kt * C_in
    C_effp = -(-C_eff // 8) * 8                             # sublane-align channels

    # ---- lane geometry: pad V to a divisor of 128, cap the A block at 128 lanes ----
    V_pad = _pad_v(V)
    t_blk = max(1, 128 // V_pad)
    TBV = t_blk * V_pad
    n_tbv = -(-T_out // t_blk)

    # DMA slab size: M sub-blocks of TBV lanes per grid step (grow toward >=512
    # lanes, keep >=8 grid steps so both v7x TensorCores stay busy).
    M = 1
    while (M * TBV < 512 and 2 * M <= n_tbv
           and N * (-(-n_tbv // (2 * M))) >= 8):
        M *= 2
    n_slab = -(-n_tbv // M)
    T_pad = n_slab * M * t_blk

    # ---- pad x to (N, C_effp, T_pad, V_pad) and merge (T,V) into one lane axis ----
    x_cat = jnp.pad(x_cat, ((0, 0), (0, C_effp - C_eff),
                            (0, T_pad - T_out), (0, V_pad - V)))
    x_lanes = x_cat.reshape(N, C_effp, T_pad * V_pad)

    # ---- fold layer constants (hoist out per layer in a real model) ----
    A_pad = jnp.zeros((K, V_pad, V_pad), A.dtype).at[:, :V, :V].set(A)
    eye = jnp.eye(t_blk, dtype=A.dtype)
    a_big = jnp.stack([jnp.kron(eye, A_pad[k]) for k in range(K)])   # (K, TBV, TBV)

    w_fold = jnp.transpose(weight[..., 0], (0, 2, 1)).reshape(O, C_eff)
    w_fold = jnp.pad(w_fold, ((0, 0), (0, C_effp - C_eff)))          # (O, C_effp)

    a_first = C_effp <= C_out
    if a_first:
        # [W_1 .. W_K] along columns; bias folded through colsum(A_k)
        w_op = jnp.transpose(w_fold.reshape(K, C_out, C_effp),
                             (1, 0, 2)).reshape(C_out, K * C_effp)
        b_eff = jnp.einsum('kc,kw->cw', bias.reshape(K, C_out), A_pad.sum(axis=1))
        b_op = jnp.tile(b_eff, (1, t_blk))                           # (C_out, TBV)
        kernel = _scn_a_first_kernel
    else:
        w_op = w_fold                                                # (K*C_out, C_effp)
        b_op = bias.reshape(O, 1)
        kernel = _scn_w_first_kernel

    dot_dtype = jnp.bfloat16 if use_bf16 else jnp.float32
    x_lanes = x_lanes.astype(dot_dtype)
    w_op = w_op.astype(dot_dtype)
    a_big = a_big.astype(dot_dtype)
    b_op = b_op.astype(jnp.float32)

    slab = M * TBV
    out_flat = pl.pallas_call(
        kernel,
        out_shape=jax.ShapeDtypeStruct((N, C_out, T_pad * V_pad), jnp.float32),
        grid_spec=pltpu.PrefetchScalarGridSpec(
            num_scalar_prefetch=0,
            grid=(N, n_slab),
            in_specs=[
                pl.BlockSpec((1, C_effp, slab), lambda n, s: (n, 0, s)),
                pl.BlockSpec(w_op.shape, lambda n, s: (0, 0)),        # VMEM-resident
                pl.BlockSpec(b_op.shape, lambda n, s: (0, 0)),        # VMEM-resident
                pl.BlockSpec(a_big.shape, lambda n, s: (0, 0, 0)),    # VMEM-resident
            ],
            out_specs=pl.BlockSpec((1, C_out, slab), lambda n, s: (n, 0, s)),
        ),
        compiler_params=pltpu.CompilerParams(
            dimension_semantics=("parallel", "parallel")),
    )(x_lanes, w_op, b_op, a_big)

    out = out_flat.reshape(N, C_out, T_pad, V_pad)[:, :, :T_out, :V]
    return out, A


def scn_reference(x, A, weight, bias, kernel_size,
                  t_stride=1, t_padding=0, t_dilation=1):
    """Pure-JAX reference mirroring the PyTorch module exactly."""
    y = jax.lax.conv_general_dilated(
        x, weight,
        window_strides=(t_stride, 1),
        padding=((t_padding, t_padding), (0, 0)),
        rhs_dilation=(t_dilation, 1),
        dimension_numbers=("NCHW", "OIHW", "NCHW"))
    y = y + bias[None, :, None, None]
    n, kc, t, v = y.shape
    y = y.reshape(n, kernel_size, kc // kernel_size, t, v)
    return jnp.einsum("nkctv,kvw->nctw", y, A), A


if __name__ == "__main__":
    key = jax.random.PRNGKey(0)

    # --- case 1: pointwise conv, V | 128, A-first path (C_eff <= C_out) ---
    N, C_in, C_out, T, V, K, kt = 2, 4, 8, 16, 16, 3, 1
    k1, k2, k3, k4, key = jax.random.split(key, 5)
    x = jax.random.normal(k1, (N, C_in, T, V), dtype=jnp.float32)
    A = jax.random.uniform(k2, (K, V, V), dtype=jnp.float32)
    w = 0.1 * jax.random.normal(k3, (K * C_out, C_in, kt, 1), dtype=jnp.float32)
    b = 0.1 * jax.random.normal(k4, (K * C_out,), dtype=jnp.float32)

    out, A_out = scn_forward(x, A, w, b, kernel_size=K)
    out = jax.block_until_ready(out)
    ref, _ = scn_reference(x, A, w, b, kernel_size=K)
    assert out.shape == (N, C_out, T, V)
    assert jnp.allclose(out, ref, atol=1e-4, rtol=1e-4), "case1 f32 mismatch"

    # bf16 MXU-operand path (same case, looser tolerance)
    out_bf, _ = scn_forward(x, A, w, b, kernel_size=K, use_bf16=True)
    out_bf = jax.block_until_ready(out_bf)
    assert jnp.allclose(out_bf, ref, atol=5e-2, rtol=5e-2), "case1 bf16 mismatch"

    # --- case 2: V=25 (padded to 32), kt=3 temporal conv, W-first path ---
    N2, C_in2, C_out2, T2, V2, K2, kt2 = 2, 16, 8, 12, 25, 2, 3
    k1, k2, k3, k4, key = jax.random.split(key, 5)
    x2 = jax.random.normal(k1, (N2, C_in2, T2, V2), dtype=jnp.float32)
    A2 = jax.random.uniform(k2, (K2, V2, V2), dtype=jnp.float32)
    w2 = 0.1 * jax.random.normal(k3, (K2 * C_out2, C_in2, kt2, 1), dtype=jnp.float32)
    b2 = 0.1 * jax.random.normal(k4, (K2 * C_out2,), dtype=jnp.float32)

    out2, _ = scn_forward(x2, A2, w2, b2, kernel_size=K2,
                          t_stride=1, t_padding=1, t_dilation=1)
    out2 = jax.block_until_ready(out2)
    ref2, _ = scn_reference(x2, A2, w2, b2, kernel_size=K2,
                            t_stride=1, t_padding=1, t_dilation=1)
    assert out2.shape == ref2.shape
    assert jnp.allclose(out2, ref2, atol=1e-4, rtol=1e-4), "case2 f32 mismatch"

    print("KERNEL_OK")
</pallas_src>

<mosaic_0001>
module attributes {stable_mosaic.version = 11 : i64} {
  func.func @_scn_a_first_kernel(%arg0: i32, %arg1: i32, %arg2: memref<1x8x128xf32, #tpu.memory_space<vmem>>, %arg3: memref<8x24xf32, #tpu.memory_space<vmem>>, %arg4: memref<8x128xf32, #tpu.memory_space<vmem>>, %arg5: memref<3x128x128xf32, #tpu.memory_space<vmem>>, %arg6: memref<1x8x128xf32, #tpu.memory_space<vmem>>) attributes {dimension_semantics = [#tpu.dimension_semantics<parallel>, #tpu.dimension_semantics<parallel>], iteration_bounds = array<i64: 2, 2>, scalar_prefetch = 0 : i64, scratch_operands = 0 : i64, tpu.core_type = #tpu.core_type<tc>, window_params = [{transform_indices = @transform_0, window_bounds = array<i64: 1, 8, 128>}, {pipeline_mode = #tpu.pipeline_mode<synchronous>, transform_indices = @transform_1, window_bounds = array<i64: 8, 24>}, {pipeline_mode = #tpu.pipeline_mode<synchronous>, transform_indices = @transform_2, window_bounds = array<i64: 8, 128>}, {pipeline_mode = #tpu.pipeline_mode<synchronous>, transform_indices = @transform_3, window_bounds = array<i64: 3, 128, 128>}, {transform_indices = @transform_4, window_bounds = array<i64: 1, 8, 128>}]} {
    %c0 = arith.constant 0 : index
    %c0_0 = arith.constant 0 : index
    %0 = vector.load %arg3[%c0, %c0_0] : memref<8x24xf32, #tpu.memory_space<vmem>>, vector<8x24xf32>
    %c0_1 = arith.constant 0 : index
    %c0_2 = arith.constant 0 : index
    %1 = vector.load %arg4[%c0_1, %c0_2] : memref<8x128xf32, #tpu.memory_space<vmem>>, vector<8x128xf32>
    %c0_3 = arith.constant 0 : index
    %c0_4 = arith.constant 0 : index
    %c0_5 = arith.constant 0 : index
    %2 = vector.load %arg2[%c0_3, %c0_4, %c0_5] : memref<1x8x128xf32, #tpu.memory_space<vmem>>, vector<1x8x128xf32>
    %3 = vector.shape_cast %2 : vector<1x8x128xf32> to vector<8x128xf32>
    %c0_6 = arith.constant 0 : index
    %c0_7 = arith.constant 0 : index
    %c0_8 = arith.constant 0 : index
    %4 = vector.load %arg5[%c0_6, %c0_7, %c0_8] : memref<3x128x128xf32, #tpu.memory_space<vmem>>, vector<1x128x128xf32>
    %5 = vector.shape_cast %4 : vector<1x128x128xf32> to vector<128x128xf32>
    %cst = arith.constant dense<0.000000e+00> : vector<8x128xf32>
    %6 = tpu.matmul %3, %5, %cst {dimension_numbers = #tpu.dot_dimension_numbers<[1], [0], [0], [1], [0, 0, 1, 1], [], []>} : vector<8x128xf32>, vector<128x128xf32>, vector<8x128xf32> -> vector<8x128xf32>
    %c1 = arith.constant 1 : index
    %c0_9 = arith.constant 0 : index
    %c0_10 = arith.constant 0 : index
    %7 = vector.load %arg5[%c1, %c0_9, %c0_10] : memref<3x128x128xf32, #tpu.memory_space<vmem>>, vector<1x128x128xf32>
    %8 = vector.shape_cast %7 : vector<1x128x128xf32> to vector<128x128xf32>
    %cst_11 = arith.constant dense<0.000000e+00> : vector<8x128xf32>
    %9 = tpu.matmul %3, %8, %cst_11 {dimension_numbers = #tpu.dot_dimension_numbers<[1], [0], [0], [1], [0, 0, 1, 1], [], []>} : vector<8x128xf32>, vector<128x128xf32>, vector<8x128xf32> -> vector<8x128xf32>
    %c2 = arith.constant 2 : index
    %c0_12 = arith.constant 0 : index
    %c0_13 = arith.constant 0 : index
    %10 = vector.load %arg5[%c2, %c0_12, %c0_13] : memref<3x128x128xf32, #tpu.memory_space<vmem>>, vector<1x128x128xf32>
    %11 = vector.shape_cast %10 : vector<1x128x128xf32> to vector<128x128xf32>
    %cst_14 = arith.constant dense<0.000000e+00> : vector<8x128xf32>
    %12 = tpu.matmul %3, %11, %cst_14 {dimension_numbers = #tpu.dot_dimension_numbers<[1], [0], [0], [1], [0, 0, 1, 1], [], []>} : vector<8x128xf32>, vector<128x128xf32>, vector<8x128xf32> -> vector<8x128xf32>
    %13 = tpu.concatenate %6, %9, %12 in 0 : vector<8x128xf32>, vector<8x128xf32>, vector<8x128xf32> -> vector<24x128xf32>
    %cst_15 = arith.constant dense<0.000000e+00> : vector<8x128xf32>
    %14 = tpu.matmul %0, %13, %cst_15 {dimension_numbers = #tpu.dot_dimension_numbers<[1], [0], [0], [1], [0, 0, 1, 1], [], []>} : vector<8x24xf32>, vector<24x128xf32>, vector<8x128xf32> -> vector<8x128xf32>
    %15 = arith.addf %14, %1 : vector<8x128xf32>
    %c0_16 = arith.constant 0 : index
    %c0_17 = arith.constant 0 : index
    %c0_18 = arith.constant 0 : index
    %16 = vector.load %arg6[%c0_16, %c0_17, %c0_18] : memref<1x8x128xf32, #tpu.memory_space<vmem>>, vector<1x8x128xf32>
    %17 = vector.shape_cast %16 : vector<1x8x128xf32> to vector<8x128xf32>
    %18 = vector.shape_cast %15 : vector<8x128xf32> to vector<1x8x128xf32>
    tpu.vector_store %arg6[%c0_16, %c0_17, %c0_18], %18 {strides = array<i32>} : memref<1x8x128xf32, #tpu.memory_space<vmem>>, vector<1x8x128xf32>,
    return
  }
  func.func @transform_0(%arg0: i32, %arg1: i32) -> (i32, i32, i32) {
    %c0_i32 = arith.constant 0 : i32
    %c0_i32_0 = arith.constant 0 : i32
    return %arg0, %c0_i32, %arg1 : i32, i32, i32
  }
  func.func @transform_1(%arg0: i32, %arg1: i32) -> (i32, i32) {
    %c0_i32 = arith.constant 0 : i32
    %c0_i32_0 = arith.constant 0 : i32
    %c0_i32_1 = arith.constant 0 : i32
    return %c0_i32, %c0_i32_0 : i32, i32
  }
  func.func @transform_2(%arg0: i32, %arg1: i32) -> (i32, i32) {
    %c0_i32 = arith.constant 0 : i32
    %c0_i32_0 = arith.constant 0 : i32
    %c0_i32_1 = arith.constant 0 : i32
    return %c0_i32, %c0_i32_0 : i32, i32
  }
  func.func @transform_3(%arg0: i32, %arg1: i32) -> (i32, i32, i32) {
    %c0_i32 = arith.constant 0 : i32
    %c0_i32_0 = arith.constant 0 : i32
    %c0_i32_1 = arith.constant 0 : i32
    %c0_i32_2 = arith.constant 0 : i32
    return %c0_i32, %c0_i32_0, %c0_i32_1 : i32, i32, i32
  }
  func.func @transform_4(%arg0: i32, %arg1: i32) -> (i32, i32, i32) {
    %c0_i32 = arith.constant 0 : i32
    %c0_i32_0 = arith.constant 0 : i32
    return %arg0, %c0_i32, %arg1 : i32, i32, i32
  }
}

</mosaic_0001>

<llo_original>
// kernel: tpu_custom_call.1
$region0: #{tpu_custom_call.1}
  #allocation0 [shape = 'u32[]', space=smem, size = 0x4, offset = 0x4, fixed_abs, tag = 'smem constant byte address 0x4 - core index']
  #allocation1 [shape = 'u32[144,128]{1,0:T(1,128)}', space=vmem, size = 0x12000, scoped, tag = 'internal scratch']
  %s0 = inlined_call_operand.hbm [shape: f32[2,8,256], index: 0, kind: input, shape index: {}]
  %s1 = inlined_call_operand.hbm [shape: f32[8,24], index: 1, kind: input, shape index: {}]
  %s2 = inlined_call_operand.hbm [shape: f32[8,128], index: 2, kind: input, shape index: {}]
  %s3 = inlined_call_operand.hbm [shape: f32[3,128,128], index: 3, kind: input, shape index: {}]
  %s4 = inlined_call_operand.hbm [shape: f32[2,8,256], index: 4, kind: output, shape index: {}]
  %s5 = sld [smem:[#allocation0]]
  $region65: #{tpu_custom_call.1} parent=0
    _
  %s7 = ssub.s32 1, %s5
  %s8 = scalar_select 0, %s7, %s5
  $region1: #{tpu_custom_call.1} parent=0
    #allocation2 [shape = 'u8[8192]{0}', space=vmem, size = 0x2000, scoped, tag = 'input window, operand 0']
    #allocation3 [shape = 's32[2]{0}', space=sflag, size = 0x8, scoped, tag = 'scoped memory for tpu_custom_call.1']
    #allocation4 [shape = 's32[2]{0}', space=sflag, size = 0x8, scoped, tag = 'scoped memory for tpu_custom_call.1']
    #allocation5 [shape = 'u8[4096]{0}', space=vmem, size = 0x1000, scoped, tag = 'input window, operand 1, single buffered']
    #allocation6 [shape = 's32[1]{0}', space=sflag, size = 0x4, scoped, tag = 'scoped memory for tpu_custom_call.1']
    #allocation7 [shape = 'u8[4096]{0}', space=vmem, size = 0x1000, scoped, tag = 'input window, operand 2, single buffered']
    #allocation8 [shape = 'u8[196608]{0}', space=vmem, size = 0x30000, scoped, tag = 'input window, operand 3, single buffered']
    #allocation9 [shape = 's32[1]{0}', space=sflag, size = 0x4, scoped, tag = 'scoped memory for tpu_custom_call.1']
    #allocation10 [shape = 'u8[8192]{0}', space=vmem, size = 0x2000, scoped, tag = 'output window, operand 0']
    %9 = vsyncpa [#allocation3], 0
    %s10 = scalar_lea.sflag [#allocation3], 1
    %11 = vsyncpa %s10, 0
    %12 = vsyncpa [#allocation6], 0
    %13 = vsyncpa [#allocation9], 0
    %14 = vsyncpa [#allocation4], 0
    %s15 = scalar_lea.sflag [#allocation4], 1
    %16 = vsyncpa %s15, 0
    loop: start=0, step=1, limit=6
    $region2: #{tpu_custom_call.1} parent=1 // loop_pre_header
      _
    $region3: #{tpu_custom_call.1} parent=1 // loop_header
      %s18 = sphi 0, %s22
      %p19 = scmp.ge.s32.totalorder %s18, 6
      %s25 = sphi 0, %s37
      %s26 = sphi 0, %s33
      %s27 = sphi 0, %s25
      %s28 = sphi 0, %s26
      %s29 = sphi 0, %s27
      %s30 = sphi 0, %s28
      %s42 = sphi 0, %s44
      %s45 = sphi 0, %s42
      %s46 = sphi 0, %s45
      %s62 = sphi 0, %s46
      %s66 = sphi 0, %s66
      %s68 = sphi 0, %s66
      %s69 = sphi 0, %s68
      %s83 = sphi 0, %s69
      %s87 = sphi 0, %s87
      %s89 = sphi 0, %s87
      %s90 = sphi 0, %s89
      %s104 = sphi 0, %s90
      %s108 = sphi 0, %s108
      %s110 = sphi 0, %s108
      %s111 = sphi 0, %s110
      %s125 = sphi 0, %s111
      %s133 = sphi 0, %s135
      %s136 = sphi 0, %s133
      %s137 = sphi 0, %s136
      %s153 = sphi 0, %s137
    $region4: #{tpu_custom_call.1} parent=1 // loop_header_branch
      %21 = sbr.rel (%p19) target = $region8
    $region5: #{tpu_custom_call.1} parent=1 // loop_body
      %s23 = ssub.s32 %s18, 1
      %s24 = ssub.s32 %s18, 2
      %s31 = sadd.s32 1, %s26
      %p32 = scmp.ge.s32.totalorder %s31, 2
      %s33 = scalar_select %p32, 0, %s31
      %s34 = sadd.s32 1, %s25
      %s35 = scalar_select %p32, %s34, %s25
      %p36 = scmp.ge.s32.totalorder %s35, 2
      %s37 = scalar_select %p36, 0, %s35
      %s38 = ssub.s32 %s25, %s37
      %s39 = ssub.s32 %s26, %s33
      %s40 = sor.u32 %s38, %s39
      %p41 = scmp.eq.s32.totalorder %s40, 0
      %s43 = sadd.s32 %s42, 1
      %s44 = scalar_select %p41, %s42, %s43
      %p47 = pneg %p41
      %p48 = scmp.eq.s32.totalorder %s18, 3
      %p49 = por %p47, %p48
      %p50 = scmp.ne.s32.totalorder %s42, %s45
      %p51 = scmp.eq.s32.totalorder %s18, 0
      %p52 = por %p50, %p51
      %p53 = scmp.ne.s32.totalorder %s42, %s45
      %p54 = scmp.eq.s32.totalorder %s23, 3
      %p55 = por %p53, %p54
      %p56 = scmp.ne.s32.totalorder %s45, %s46
      %p57 = scmp.eq.s32.totalorder %s23, 0
      %p58 = por %p56, %p57
      %p59 = scmp.ne.s32.totalorder %s45, %s46
      %p60 = scmp.eq.s32.totalorder %s24, 3
      %p61 = por %p59, %p60
      %p63 = scmp.ne.s32.totalorder %s46, %s62
      %p64 = scmp.eq.s32.totalorder %s24, 0
      %p65 = por %p63, %p64
      %s67 = sadd.s32 %s66, 1
      %p70 = scmp.eq.s32.totalorder %s18, 3
      %p71 = scmp.ne.s32.totalorder %s66, %s68
      %p72 = scmp.eq.s32.totalorder %s18, 0
      %p73 = por %p71, %p72
      %p74 = scmp.ne.s32.totalorder %s66, %s68
      %p75 = scmp.eq.s32.totalorder %s23, 3
      %p76 = por %p74, %p75
      %p77 = scmp.ne.s32.totalorder %s68, %s69
      %p78 = scmp.eq.s32.totalorder %s23, 0
      %p79 = por %p77, %p78
      %p80 = scmp.ne.s32.totalorder %s68, %s69
      %p81 = scmp.eq.s32.totalorder %s24, 3
      %p82 = por %p80, %p81
      %p84 = scmp.ne.s32.totalorder %s69, %s83
      %p85 = scmp.eq.s32.totalorder %s24, 0
      %p86 = por %p84, %p85
      %s88 = sadd.s32 %s87, 1
      %p91 = scmp.eq.s32.totalorder %s18, 3
      %p92 = scmp.ne.s32.totalorder %s87, %s89
      %p93 = scmp.eq.s32.totalorder %s18, 0
      %p94 = por %p92, %p93
      %p95 = scmp.ne.s32.totalorder %s87, %s89
      %p96 = scmp.eq.s32.totalorder %s23, 3
      %p97 = por %p95, %p96
      %p98 = scmp.ne.s32.totalorder %s89, %s90
      %p99 = scmp.eq.s32.totalorder %s23, 0
      %p100 = por %p98, %p99
      %p101 = scmp.ne.s32.totalorder %s89, %s90
      %p102 = scmp.eq.s32.totalorder %s24, 3
      %p103 = por %p101, %p102
      %p105 = scmp.ne.s32.totalorder %s90, %s104
      %p106 = scmp.eq.s32.totalorder %s24, 0
      %p107 = por %p105, %p106
      %s109 = sadd.s32 %s108, 1
      %p112 = scmp.eq.s32.totalorder %s18, 3
      %p113 = scmp.ne.s32.totalorder %s108, %s110
      %p114 = scmp.eq.s32.totalorder %s18, 0
      %p115 = por %p113, %p114
      %p116 = scmp.ne.s32.totalorder %s108, %s110
      %p117 = scmp.eq.s32.totalorder %s23, 3
      %p118 = por %p116, %p117
      %p119 = scmp.ne.s32.totalorder %s110, %s111
      %p120 = scmp.eq.s32.totalorder %s23, 0
      %p121 = por %p119, %p120
      %p122 = scmp.ne.s32.totalorder %s110, %s111
      %p123 = scmp.eq.s32.totalorder %s24, 3
      %p124 = por %p122, %p123
      %p126 = scmp.ne.s32.totalorder %s111, %s125
      %p127 = scmp.eq.s32.totalorder %s24, 0
      %p128 = por %p126, %p127
      %s129 = ssub.s32 %s25, %s37
      %s130 = ssub.s32 %s26, %s33
      %s131 = sor.u32 %s129, %s130
      %p132 = scmp.eq.s32.totalorder %s131, 0
      %s134 = sadd.s32 %s133, 1
      %s135 = scalar_select %p132, %s133, %s134
      %p138 = pneg %p132
      %p139 = scmp.eq.s32.totalorder %s18, 3
      %p140 = por %p138, %p139
      %p141 = scmp.ne.s32.totalorder %s133, %s136
      %p142 = scmp.eq.s32.totalorder %s18, 0
      %p143 = por %p141, %p142
      %p144 = scmp.ne.s32.totalorder %s133, %s136
      %p145 = scmp.eq.s32.totalorder %s23, 3
      %p146 = por %p144, %p145
      %p147 = scmp.ne.s32.totalorder %s136, %s137
      %p148 = scmp.eq.s32.totalorder %s23, 0
      %p149 = por %p147, %p148
      %p150 = scmp.ne.s32.totalorder %s136, %s137
      %p151 = scmp.eq.s32.totalorder %s24, 3
      %p152 = por %p150, %p151
      %p154 = scmp.ne.s32.totalorder %s137, %s153
      %p155 = scmp.eq.s32.totalorder %s24, 0
      %p156 = por %p154, %p155
      %p157 = scmp.le.s32.totalorder 1, %s18
      %p158 = scmp.lt.s32.totalorder %s18, 5
      %p159 = pnand %p157, %p158
      %p160 = pneg %p159
      // Predicated region
      $region9: #{tpu_custom_call.1} parent=5 // pred_check
        _
      $region10: #{tpu_custom_call.1} parent=5 // pred_check_branch
        %162 = sbr.rel (%p159) target = $region12
      $region11: #{tpu_custom_call.1} parent=5 // pred_region
        %s163 = ssub.s32 %s18, 1
        // Predicated region
        $region13: #{tpu_custom_call.1} parent=11 // pred_check
          %p164 = pneg %p79
        $region14: #{tpu_custom_call.1} parent=11 // pred_check_branch
          %166 = sbr.rel (%p164) target = $region16
        $region15: #{tpu_custom_call.1} parent=11 // pred_region
          %s168 = ssub.s32 128, 128
          %169 = vsyncadd [#allocation6], %s168
          %s171 = sshll.u32 [#allocation5], 4
          %s172 = int_to_ptr.vmem [resolvable:$true] %s171
          %174 = dma.hbm_to_vmem [thread:$0]  %s1, 128, %s172, [#allocation6]
        $region16: #{tpu_custom_call.1} parent=11 // pred_fallthru
          _
        // Predicated region
        $region17: #{tpu_custom_call.1} parent=11 // pred_check
          %p175 = pneg %p100
        $region18: #{tpu_custom_call.1} parent=11 // pred_check_branch
          %177 = sbr.rel (%p175) target = $region20
        $region19: #{tpu_custom_call.1} parent=11 // pred_region
          %s179 = ssub.s32 128, 128
          %180 = vsyncadd [#allocation6], %s179
          %s182 = sshll.u32 [#allocation7], 4
          %s183 = int_to_ptr.vmem [resolvable:$true] %s182
          %185 = dma.hbm_to_vmem [thread:$0]  %s2, 128, %s183, [#allocation6]
        $region20: #{tpu_custom_call.1} parent=11 // pred_fallthru
          _
        // Predicated region
        $region21: #{tpu_custom_call.1} parent=11 // pred_check
          %p186 = pneg %p121
        $region22: #{tpu_custom_call.1} parent=11 // pred_check_branch
          %188 = sbr.rel (%p186) target = $region24
        $region23: #{tpu_custom_call.1} parent=11 // pred_region
          %s190 = ssub.s32 6144, 6144
          %191 = vsyncadd [#allocation9], %s190
          %s192 = sshll.u32 [#allocation8], 4
          %s193 = int_to_ptr.vmem [resolvable:$true] %s192
          %198 = dma.hbm_to_vmem [thread:$0]  %s3, 6144, %s193, [#allocation9], 128, 128, 8
        $region24: #{tpu_custom_call.1} parent=11 // pred_fallthru
          _
      $region12: #{tpu_custom_call.1} parent=5 // pred_fallthru
        _
      %p199 = scmp.lt.s32.totalorder %s18, 4
      // Predicated region
      $region25: #{tpu_custom_call.1} parent=5 // pred_check
        %p200 = pneg %p199
      $region26: #{tpu_custom_call.1} parent=5 // pred_check_branch
        %202 = sbr.rel (%p200) target = $region28
      $region27: #{tpu_custom_call.1} parent=5 // pred_region
        // Predicated region
        $region29: #{tpu_custom_call.1} parent=27 // pred_check
          %p203 = pneg %p52
        $region30: #{tpu_custom_call.1} parent=27 // pred_check_branch
          %205 = sbr.rel (%p203) target = $region32
        $region31: #{tpu_custom_call.1} parent=27 // pred_region
          %s206 = sand.u32 %s42, 1
          %s207 = scalar_lea.sflag [#allocation3], %s206
          %s208 = sand.u32 %s42, 1
          %s209 = smul.addr %s208, 8
          %s210 = scalar_lea.vmem [#allocation2], %s209
          %s212 = ssub.s32 128, 128
          %213 = vsyncadd %s207, %s212
          %s214 = smul.addr %s25, 2
          %s215 = sadd.s32 %s26, %s214
          %s216 = smul.addr %s215, 128
          %s217 = scalar_lea.hbm %s0, %s216
          %s219 = sshll.u32 %s210, 4
          %s220 = int_to_ptr.vmem [resolvable:$true] %s219
          %222 = dma.hbm_to_vmem [thread:$0]  %s217, 128, %s220, %s207
        $region32: #{tpu_custom_call.1} parent=27 // pred_fallthru
          _
      $region28: #{tpu_custom_call.1} parent=5 // pred_fallthru
        _
      %p223 = scmp.le.s32.totalorder 1, %s18
      %p224 = scmp.lt.s32.totalorder %s18, 5
      %p225 = pnand %p223, %p224
      %p226 = pneg %p225
      // Predicated region
      $region33: #{tpu_custom_call.1} parent=5 // pred_check
        _
      $region34: #{tpu_custom_call.1} parent=5 // pred_check_branch
        %228 = sbr.rel (%p225) target = $region36
      $region35: #{tpu_custom_call.1} parent=5 // pred_region
        %s229 = ssub.s32 %s18, 1
        %s230 = sand.u32 %s45, 1
        %s231 = scalar_lea.sflag [#allocation3], %s230
        %s232 = sand.u32 %s45, 1
        %s233 = smul.addr %s232, 8
        %s234 = scalar_lea.vmem [#allocation2], %s233
        // Predicated region
        $region37: #{tpu_custom_call.1} parent=35 // pred_check
          %p235 = pneg %p58
        $region38: #{tpu_custom_call.1} parent=35 // pred_check_branch
          %237 = sbr.rel (%p235) target = $region40
        $region39: #{tpu_custom_call.1} parent=35 // pred_region
          %238 = dma.done %s231, 128
        $region40: #{tpu_custom_call.1} parent=35 // pred_fallthru
          _
        // Predicated region
        $region41: #{tpu_custom_call.1} parent=35 // pred_check
          %p239 = pneg %p79
        $region42: #{tpu_custom_call.1} parent=35 // pred_check_branch
          %241 = sbr.rel (%p239) target = $region44
        $region43: #{tpu_custom_call.1} parent=35 // pred_region
          %242 = dma.done [#allocation6], 128
        $region44: #{tpu_custom_call.1} parent=35 // pred_fallthru
          _
        // Predicated region
        $region45: #{tpu_custom_call.1} parent=35 // pred_check
          %p243 = pneg %p100
        $region46: #{tpu_custom_call.1} parent=35 // pred_check_branch
          %245 = sbr.rel (%p243) target = $region48
        $region47: #{tpu_custom_call.1} parent=35 // pred_region
          %246 = dma.done [#allocation6], 128
        $region48: #{tpu_custom_call.1} parent=35 // pred_fallthru
          _
        // Predicated region
        $region49: #{tpu_custom_call.1} parent=35 // pred_check
          %p247 = pneg %p121
        $region50: #{tpu_custom_call.1} parent=35 // pred_check_branch
          %249 = sbr.rel (%p247) target = $region52
        $region51: #{tpu_custom_call.1} parent=35 // pred_region
          %250 = dma.done [#allocation9], 6144
        $region52: #{tpu_custom_call.1} parent=35 // pred_fallthru
          _
        %s251 = sand.u32 %s45, 1
        %s252 = scalar_lea.sflag [#allocation3], %s251
        %s253 = sand.u32 %s45, 1
        %s254 = smul.addr %s253, 8
        %s255 = scalar_lea.vmem [#allocation2], %s254
        %p256 = pneg %p58
        %p257 = pneg %p55
        %p258 = pneg %p79
        %p259 = pneg %p76
        %p260 = pneg %p100
        %p261 = pneg %p97
        %p262 = pneg %p121
        %p263 = pneg %p118
        %p264 = pneg %p149
        %p265 = pneg %p146
        %s266 = sand.u32 %s136, 1
        %s267 = scalar_lea.sflag [#allocation4], %s266
        %s268 = sand.u32 %s136, 1
        %s269 = smul.addr %s268, 8
        %s270 = scalar_lea.vmem [#allocation10], %s269
        %v271 = vld [vmem:[#allocation5] sm:$0xff]
        %v272 = vld [vmem:[#allocation7] sm:$0xff]
        %v273 = vld [vmem:[%s234] sm:$0xff]
        %v274 = vld [vmem:[#allocation8] sm:$0xff]
        %v275 = vld [vmem:[#allocation8 + $0x8] sm:$0xff]
        %v276 = vld [vmem:[#allocation8 + $0x10] sm:$0xff]
        %v277 = vld [vmem:[#allocation8 + $0x18] sm:$0xff]
        %v278 = vld [vmem:[#allocation8 + $0x20] sm:$0xff]
        %v279 = vld [vmem:[#allocation8 + $0x28] sm:$0xff]
        %v280 = vld [vmem:[#allocation8 + $0x30] sm:$0xff]
        %v281 = vld [vmem:[#allocation8 + $0x38] sm:$0xff]
        %v282 = vld [vmem:[#allocation8 + $0x40] sm:$0xff]
        %v283 = vld [vmem:[#allocation8 + $0x48] sm:$0xff]
        %v284 = vld [vmem:[#allocation8 + $0x50] sm:$0xff]
        %v285 = vld [vmem:[#allocation8 + $0x58] sm:$0xff]
        %v286 = vld [vmem:[#allocation8 + $0x60] sm:$0xff]
        %v287 = vld [vmem:[#allocation8 + $0x68] sm:$0xff]
        %v288 = vld [vmem:[#allocation8 + $0x70] sm:$0xff]
        %v289 = vld [vmem:[#allocation8 + $0x78] sm:$0xff]
        %290 = vmatprep.subr.mxu0 0.0
        %291 = vmatpush1.msra.mxu0 %v289
        %292 = vmatprep.subr.mxu0 0.0
        %293 = vmatpush1.msra.mxu0 %v288
        %294 = vmatprep.subr.mxu0 0.0
        %295 = vmatpush1.msra.mxu0 %v287
        %296 = vmatprep.subr.mxu0 0.0
        %297 = vmatpush1.msra.mxu0 %v286
        %298 = vmatprep.subr.mxu0 0.0
        %299 = vmatpush1.msra.mxu0 %v285
        %300 = vmatprep.subr.mxu0 0.0
        %301 = vmatpush1.msra.mxu0 %v284
        %302 = vmatprep.subr.mxu0 0.0
        %303 = vmatpush1.msra.mxu0 %v283
        %304 = vmatprep.subr.mxu0 0.0
        %305 = vmatpush1.msra.mxu0 %v282
        %306 = vmatprep.subr.mxu0 0.0
        %307 = vmatpush1.msra.mxu0 %v281
        %308 = vmatprep.subr.mxu0 0.0
        %309 = vmatpush1.msra.mxu0 %v280
        %310 = vmatprep.subr.mxu0 0.0
        %311 = vmatpush1.msra.mxu0 %v279
        %312 = vmatprep.subr.mxu0 0.0
        %313 = vmatpush1.msra.mxu0 %v278
        %314 = vmatprep.subr.mxu0 0.0
        %315 = vmatpush1.msra.mxu0 %v277
        %316 = vmatprep.subr.mxu0 0.0
        %317 = vmatpush1.msra.mxu0 %v276
        %318 = vmatprep.subr.mxu0 0.0
        %319 = vmatpush1.msra.mxu0 %v275
        %320 = vmatprep.subr.mxu0 0.0
        %321 = vmatpush1.msra.mxu0 %v274
        %322 = vmatprep.subr.mxu0 0.0
        %323 = vmatpush2.msra.mxu0 0.0
        %324 = vmatprep.subr.mxu0 0.0
        %325 = vmatpush2.msra.mxu0 0.0
        %326 = vmatprep.subr.mxu0 0.0
        %327 = vmatpush2.msra.mxu0 0.0
        %328 = vmatprep.subr.mxu0 0.0
        %329 = vmatpush2.msra.mxu0 0.0
        %330 = vmatprep.subr.mxu0 0.0
        %331 = vmatpush2.msra.mxu0 0.0
        %332 = vmatprep.subr.mxu0 0.0
        %333 = vmatpush2.msra.mxu0 0.0
        %334 = vmatprep.subr.mxu0 0.0
        %335 = vmatpush2.msra.mxu0 0.0
        %336 = vmatprep.subr.mxu0 0.0
        %337 = vmatpush2.msra.mxu0 0.0
        %338 = vmatprep.subr.mxu0 0.0
        %339 = vmatpush2.msra.mxu0 0.0
        %340 = vmatprep.subr.mxu0 0.0
        %341 = vmatpush2.msra.mxu0 0.0
        %342 = vmatprep.subr.mxu0 0.0
        %343 = vmatpush2.msra.mxu0 0.0
        %344 = vmatprep.subr.mxu0 0.0
        %345 = vmatpush2.msra.mxu0 0.0
        %346 = vmatprep.subr.mxu0 0.0
        %347 = vmatpush2.msra.mxu0 0.0
        %348 = vmatprep.subr.mxu0 0.0
        %349 = vmatpush2.msra.mxu0 0.0
        %350 = vmatprep.subr.mxu0 0.0
        %351 = vmatpush2.msra.mxu0 0.0
        %352 = vmatprep.subr.mxu0 0.0
        %353 = vmatpush2.msra.mxu0 0.0
        %354 = vmatprep.mubr.f32.mxu0 0.0
        %355 = vmatmul.mubr.f32.gmra.mxu0 %v273
        %v356 = vpop.f32.mrf.mxu0
        %v357 = vadd.f32 0.0, %v356
        %v358 = vpop.f32.mrf.mxu0
        %359 = vdwg.mxu0
        %s360 = scalar_lea.vmem [#allocation8], 128
        %v361 = vld [vmem:[%s360] sm:$0xff]
        %v362 = vld [vmem:[%s360 + $0x8] sm:$0xff]
        %v363 = vld [vmem:[%s360 + $0x10] sm:$0xff]
        %v364 = vld [vmem:[%s360 + $0x18] sm:$0xff]
        %v365 = vld [vmem:[%s360 + $0x20] sm:$0xff]
        %v366 = vld [vmem:[%s360 + $0x28] sm:$0xff]
        %v367 = vld [vmem:[%s360 + $0x30] sm:$0xff]
        %v368 = vld [vmem:[%s360 + $0x38] sm:$0xff]
        %v369 = vld [vmem:[%s360 + $0x40] sm:$0xff]
        %v370 = vld [vmem:[%s360 + $0x48] sm:$0xff]
        %v371 = vld [vmem:[%s360 + $0x50] sm:$0xff]
        %v372 = vld [vmem:[%s360 + $0x58] sm:$0xff]
        %v373 = vld [vmem:[%s360 + $0x60] sm:$0xff]
        %v374 = vld [vmem:[%s360 + $0x68] sm:$0xff]
        %v375 = vld [vmem:[%s360 + $0x70] sm:$0xff]
        %v376 = vld [vmem:[%s360 + $0x78] sm:$0xff]
        %377 = vmatprep.subr.mxu0 0.0
        %378 = vmatpush1.msra.mxu0 %v376
        %379 = vmatprep.subr.mxu0 0.0
        %380 = vmatpush1.msra.mxu0 %v375
        %381 = vmatprep.subr.mxu0 0.0
        %382 = vmatpush1.msra.mxu0 %v374
        %383 = vmatprep.subr.mxu0 0.0
        %384 = vmatpush1.msra.mxu0 %v373
        %385 = vmatprep.subr.mxu0 0.0
        %386 = vmatpush1.msra.mxu0 %v372
        %387 = vmatprep.subr.mxu0 0.0
        %388 = vmatpush1.msra.mxu0 %v371
        %389 = vmatprep.subr.mxu0 0.0
        %390 = vmatpush1.msra.mxu0 %v370
        %391 = vmatprep.subr.mxu0 0.0
        %392 = vmatpush1.msra.mxu0 %v369
        %393 = vmatprep.subr.mxu0 0.0
        %394 = vmatpush1.msra.mxu0 %v368
        %395 = vmatprep.subr.mxu0 0.0
        %396 = vmatpush1.msra.mxu0 %v367
        %397 = vmatprep.subr.mxu0 0.0
        %398 = vmatpush1.msra.mxu0 %v366
        %399 = vmatprep.subr.mxu0 0.0
        %400 = vmatpush1.msra.mxu0 %v365
        %401 = vmatprep.subr.mxu0 0.0
        %402 = vmatpush1.msra.mxu0 %v364
        %403 = vmatprep.subr.mxu0 0.0
        %404 = vmatpush1.msra.mxu0 %v363
        %405 = vmatprep.subr.mxu0 0.0
        %406 = vmatpush1.msra.mxu0 %v362
        %407 = vmatprep.subr.mxu0 0.0
        %408 = vmatpush1.msra.mxu0 %v361
        %409 = vmatprep.subr.mxu0 0.0
        %410 = vmatpush2.msra.mxu0 0.0
        %411 = vmatprep.subr.mxu0 0.0
        %412 = vmatpush2.msra.mxu0 0.0
        %413 = vmatprep.subr.mxu0 0.0
        %414 = vmatpush2.msra.mxu0 0.0
        %415 = vmatprep.subr.mxu0 0.0
        %416 = vmatpush2.msra.mxu0 0.0
        %417 = vmatprep.subr.mxu0 0.0
        %418 = vmatpush2.msra.mxu0 0.0
        %419 = vmatprep.subr.mxu0 0.0
        %420 = vmatpush2.msra.mxu0 0.0
        %421 = vmatprep.subr.mxu0 0.0
        %422 = vmatpush2.msra.mxu0 0.0
        %423 = vmatprep.subr.mxu0 0.0
        %424 = vmatpush2.msra.mxu0 0.0
        %425 = vmatprep.subr.mxu0 0.0
        %426 = vmatpush2.msra.mxu0 0.0
        %427 = vmatprep.subr.mxu0 0.0
        %428 = vmatpush2.msra.mxu0 0.0
        %429 = vmatprep.subr.mxu0 0.0
        %430 = vmatpush2.msra.mxu0 0.0
        %431 = vmatprep.subr.mxu0 0.0
        %432 = vmatpush2.msra.mxu0 0.0
        %433 = vmatprep.subr.mxu0 0.0
        %434 = vmatpush2.msra.mxu0 0.0
        %435 = vmatprep.subr.mxu0 0.0
        %436 = vmatpush2.msra.mxu0 0.0
        %437 = vmatprep.subr.mxu0 0.0
        %438 = vmatpush2.msra.mxu0 0.0
        %439 = vmatprep.subr.mxu0 0.0
        %440 = vmatpush2.msra.mxu0 0.0
        %441 = vmatprep.mubr.f32.mxu0 0.0
        %442 = vmatmul.mubr.f32.gmra.mxu0 %v273
        %v443 = vpop.f32.mrf.mxu0
        %v444 = vadd.f32 0.0, %v443
        %v445 = vpop.f32.mrf.mxu0
        %446 = vdwg.mxu0
        %s447 = scalar_lea.vmem [#allocation8], 256
        %v448 = vld [vmem:[%s447] sm:$0xff]
        %v449 = vld [vmem:[%s447 + $0x8] sm:$0xff]
        %v450 = vld [vmem:[%s447 + $0x10] sm:$0xff]
        %v451 = vld [vmem:[%s447 + $0x18] sm:$0xff]
        %v452 = vld [vmem:[%s447 + $0x20] sm:$0xff]
        %v453 = vld [vmem:[%s447 + $0x28] sm:$0xff]
        %v454 = vld [vmem:[%s447 + $0x30] sm:$0xff]
        %v455 = vld [vmem:[%s447 + $0x38] sm:$0xff]
        %v456 = vld [vmem:[%s447 + $0x40] sm:$0xff]
        %v457 = vld [vmem:[%s447 + $0x48] sm:$0xff]
        %v458 = vld [vmem:[%s447 + $0x50] sm:$0xff]
        %v459 = vld [vmem:[%s447 + $0x58] sm:$0xff]
        %v460 = vld [vmem:[%s447 + $0x60] sm:$0xff]
        %v461 = vld [vmem:[%s447 + $0x68] sm:$0xff]
        %v462 = vld [vmem:[%s447 + $0x70] sm:$0xff]
        %v463 = vld [vmem:[%s447 + $0x78] sm:$0xff]
        %464 = vmatprep.subr.mxu0 0.0
        %465 = vmatpush1.msra.mxu0 %v463
        %466 = vmatprep.subr.mxu0 0.0
        %467 = vmatpush1.msra.mxu0 %v462
        %468 = vmatprep.subr.mxu0 0.0
        %469 = vmatpush1.msra.mxu0 %v461
        %470 = vmatprep.subr.mxu0 0.0
        %471 = vmatpush1.msra.mxu0 %v460
        %472 = vmatprep.subr.mxu0 0.0
        %473 = vmatpush1.msra.mxu0 %v459
        %474 = vmatprep.subr.mxu0 0.0
        %475 = vmatpush1.msra.mxu0 %v458
        %476 = vmatprep.subr.mxu0 0.0
        %477 = vmatpush1.msra.mxu0 %v457
        %478 = vmatprep.subr.mxu0 0.0
        %479 = vmatpush1.msra.mxu0 %v456
        %480 = vmatprep.subr.mxu0 0.0
        %481 = vmatpush1.msra.mxu0 %v455
        %482 = vmatprep.subr.mxu0 0.0
        %483 = vmatpush1.msra.mxu0 %v454
        %484 = vmatprep.subr.mxu0 0.0
        %485 = vmatpush1.msra.mxu0 %v453
        %486 = vmatprep.subr.mxu0 0.0
        %487 = vmatpush1.msra.mxu0 %v452
        %488 = vmatprep.subr.mxu0 0.0
        %489 = vmatpush1.msra.mxu0 %v451
        %490 = vmatprep.subr.mxu0 0.0
        %491 = vmatpush1.msra.mxu0 %v450
        %492 = vmatprep.subr.mxu0 0.0
        %493 = vmatpush1.msra.mxu0 %v449
        %494 = vmatprep.subr.mxu0 0.0
        %495 = vmatpush1.msra.mxu0 %v448
        %496 = vmatprep.subr.mxu0 0.0
        %497 = vmatpush2.msra.mxu0 0.0
        %498 = vmatprep.subr.mxu0 0.0
        %499 = vmatpush2.msra.mxu0 0.0
        %500 = vmatprep.subr.mxu0 0.0
        %501 = vmatpush2.msra.mxu0 0.0
        %502 = vmatprep.subr.mxu0 0.0
        %503 = vmatpush2.msra.mxu0 0.0
        %504 = vmatprep.subr.mxu0 0.0
        %505 = vmatpush2.msra.mxu0 0.0
        %506 = vmatprep.subr.mxu0 0.0
        %507 = vmatpush2.msra.mxu0 0.0
        %508 = vmatprep.subr.mxu0 0.0
        %509 = vmatpush2.msra.mxu0 0.0
        %510 = vmatprep.subr.mxu0 0.0
        %511 = vmatpush2.msra.mxu0 0.0
        %512 = vmatprep.subr.mxu0 0.0
        %513 = vmatpush2.msra.mxu0 0.0
        %514 = vmatprep.subr.mxu0 0.0
        %515 = vmatpush2.msra.mxu0 0.0
        %516 = vmatprep.subr.mxu0 0.0
        %517 = vmatpush2.msra.mxu0 0.0
        %518 = vmatprep.subr.mxu0 0.0
        %519 = vmatpush2.msra.mxu0 0.0
        %520 = vmatprep.subr.mxu0 0.0
        %521 = vmatpush2.msra.mxu0 0.0
        %522 = vmatprep.subr.mxu0 0.0
        %523 = vmatpush2.msra.mxu0 0.0
        %524 = vmatprep.subr.mxu0 0.0
        %525 = vmatpush2.msra.mxu0 0.0
        %526 = vmatprep.subr.mxu0 0.0
        %527 = vmatpush2.msra.mxu0 0.0
        %528 = vmatprep.mubr.f32.mxu0 0.0
        %529 = vmatmul.mubr.f32.gmra.mxu0 %v273
        %v530 = vpop.f32.mrf.mxu0
        %v531 = vadd.f32 0.0, %v530
        %v532 = vpop.f32.mrf.mxu0
        %533 = vdwg.mxu0
        %vm534 = vcmask 195584
        %v536 = vsel %vm534, %v271, 0
        %538 = vmatprep.subr.mxu0 0.0
        %539 = vmatpush1.msra.mxu0 0.0
        %540 = vmatprep.subr.mxu0 0.0
        %541 = vmatpush1.msra.mxu0 0.0
        %542 = vmatprep.subr.mxu0 0.0
        %543 = vmatpush1.msra.mxu0 0.0
        %544 = vmatprep.subr.mxu0 0.0
        %545 = vmatpush1.msra.mxu0 0.0
        %546 = vmatprep.subr.mxu0 0.0
        %547 = vmatpush1.msra.mxu0 0.0
        %548 = vmatprep.subr.mxu0 0.0
        %549 = vmatpush1.msra.mxu0 0.0
        %550 = vmatprep.subr.mxu0 0.0
        %551 = vmatpush1.msra.mxu0 0.0
        %552 = vmatprep.subr.mxu0 0.0
        %553 = vmatpush1.msra.mxu0 0.0
        %554 = vmatprep.subr.mxu0 0.0
        %555 = vmatpush1.msra.mxu0 0.0
        %556 = vmatprep.subr.mxu0 0.0
        %557 = vmatpush1.msra.mxu0 0.0
        %558 = vmatprep.subr.mxu0 0.0
        %559 = vmatpush1.msra.mxu0 0.0
        %560 = vmatprep.subr.mxu0 0.0
        %561 = vmatpush1.msra.mxu0 0.0
        %562 = vmatprep.subr.mxu0 0.0
        %563 = vmatpush1.msra.mxu0 0.0
        %564 = vmatprep.subr.mxu0 0.0
        %565 = vmatpush1.msra.mxu0 %v531
        %566 = vmatprep.subr.mxu0 0.0
        %567 = vmatpush1.msra.mxu0 %v444
        %568 = vmatprep.subr.mxu0 0.0
        %569 = vmatpush1.msra.mxu0 %v357
        %570 = vmatprep.subr.mxu0 0.0
        %571 = vmatpush2.msra.mxu0 0.0
        %572 = vmatprep.subr.mxu0 0.0
        %573 = vmatpush2.msra.mxu0 0.0
        %574 = vmatprep.subr.mxu0 0.0
        %575 = vmatpush2.msra.mxu0 0.0
        %576 = vmatprep.subr.mxu0 0.0
        %577 = vmatpush2.msra.mxu0 0.0
        %578 = vmatprep.subr.mxu0 0.0
        %579 = vmatpush2.msra.mxu0 0.0
        %580 = vmatprep.subr.mxu0 0.0
        %581 = vmatpush2.msra.mxu0 0.0
        %582 = vmatprep.subr.mxu0 0.0
        %583 = vmatpush2.msra.mxu0 0.0
        %584 = vmatprep.subr.mxu0 0.0
        %585 = vmatpush2.msra.mxu0 0.0
        %586 = vmatprep.subr.mxu0 0.0
        %587 = vmatpush2.msra.mxu0 0.0
        %588 = vmatprep.subr.mxu0 0.0
        %589 = vmatpush2.msra.mxu0 0.0
        %590 = vmatprep.subr.mxu0 0.0
        %591 = vmatpush2.msra.mxu0 0.0
        %592 = vmatprep.subr.mxu0 0.0
        %593 = vmatpush2.msra.mxu0 0.0
        %594 = vmatprep.subr.mxu0 0.0
        %595 = vmatpush2.msra.mxu0 0.0
        %596 = vmatprep.subr.mxu0 0.0
        %597 = vmatpush2.msra.mxu0 0.0
        %598 = vmatprep.subr.mxu0 0.0
        %599 = vmatpush2.msra.mxu0 0.0
        %600 = vmatprep.subr.mxu0 0.0
        %601 = vmatpush2.msra.mxu0 0.0
        %602 = vmatprep.mubr.f32.mxu0 0.0
        %603 = vmatmul.mubr.f32.gmra.mxu0 %v536
        %v604 = vpop.f32.mrf.mxu0
        %v605 = vadd.f32 %v272, %v604
        %v606 = vpop.f32.mrf.mxu0
        %607 = vdwg.mxu0
        %608 = vst [vmem:[%s270] sm:$0xff] %v605
        %s609 = sand.u32 %s136, 1
        %s610 = scalar_lea.sflag [#allocation4], %s609
        %s611 = sand.u32 %s136, 1
        %s612 = smul.addr %s611, 8
        %s613 = scalar_lea.vmem [#allocation10], %s612
        // Predicated region
        $region53: #{tpu_custom_call.1} parent=35 // pred_check
          %p614 = pneg %p146
        $region54: #{tpu_custom_call.1} parent=35 // pred_check_branch
          %616 = sbr.rel (%p614) target = $region56
        $region55: #{tpu_custom_call.1} parent=35 // pred_region
          %s618 = ssub.s32 128, 128
          %619 = vsyncadd %s610, %s618
          %s620 = smul.addr %s27, 2
          %s621 = sadd.s32 %s28, %s620
          %s622 = smul.addr %s621, 128
          %s623 = scalar_lea.hbm %s4, %s622
          %s625 = sshll.u32 %s613, 4
          %s626 = int_to_ptr.vmem [resolvable:$true] %s625
          %628 = dma.vmem_to_hbm [thread:$0]  %s626, 128, %s623, %s610
        $region56: #{tpu_custom_call.1} parent=35 // pred_fallthru
          _
      $region36: #{tpu_custom_call.1} parent=5 // pred_fallthru
        _
      %p629 = scmp.le.s32.totalorder 2, %s18
      // Predicated region
      $region57: #{tpu_custom_call.1} parent=5 // pred_check
        %p630 = pneg %p629
      $region58: #{tpu_custom_call.1} parent=5 // pred_check_branch
        %632 = sbr.rel (%p630) target = $region60
      $region59: #{tpu_custom_call.1} parent=5 // pred_region
        %s633 = ssub.s32 %s18, 2
        // Predicated region
        $region61: #{tpu_custom_call.1} parent=59 // pred_check
          %p634 = pneg %p152
        $region62: #{tpu_custom_call.1} parent=59 // pred_check_branch
          %636 = sbr.rel (%p634) target = $region64
        $region63: #{tpu_custom_call.1} parent=59 // pred_region
          %s637 = sand.u32 %s137, 1
          %s638 = scalar_lea.sflag [#allocation4], %s637
          %s639 = sand.u32 %s137, 1
          %s640 = smul.addr %s639, 8
          %s641 = scalar_lea.vmem [#allocation10], %s640
          %642 = dma.done %s638, 128
        $region64: #{tpu_custom_call.1} parent=59 // pred_fallthru
          _
      $region60: #{tpu_custom_call.1} parent=5 // pred_fallthru
        _
    $region6: #{tpu_custom_call.1} parent=1 // loop_footer
      %s22 = sadd.s32 1, %s18
    $region7: #{tpu_custom_call.1} parent=1 // loop_footer_branch
      %17 = sbr.rel target = $region3
    $region8: #{tpu_custom_call.1} parent=1 // loop_exit
      _
    %643 = vsyncpa [#allocation3], 1
    %s644 = scalar_lea.sflag [#allocation3], 1
    %645 = vsyncpa %s644, 1
    %646 = vsyncpa [#allocation6], 1
    %647 = vsyncpa [#allocation9], 1
    %648 = vsyncpa [#allocation4], 1
    %s649 = scalar_lea.sflag [#allocation4], 1
    %650 = vsyncpa %s649, 1

</llo_original>
